<compile_context>
chip_gen: v7x
topology: tpu7x:2x2x1
jax: 0.10.0
libtpu: 0.0.40
codegen_flags: <defaults>
</compile_context>

<pallas_src>
import functools
import math

import jax
import jax.numpy as jnp
from jax.experimental import pallas as pl
from jax.experimental.pallas import tpu as pltpu

LANE = 128


def _gelu_tanh(x):
    # tanh-approximate GELU.  PyTorch F.gelu defaults to the erf form; the
    # tanh approximation differs by < 1e-3 and lowers cleanly to the EUP.
    c = math.sqrt(2.0 / math.pi)
    return 0.5 * x * (1.0 + jnp.tanh(c * (x + 0.044715 * x * x * x)))


def _round_up(n, m):
    return (n + m - 1) // m * m


@functools.lru_cache(maxsize=1)
def _conv_dtype_and_vmem_limit():
    """Chip-generation gating: conv/GELU compute dtype + scoped-VMEM budget."""
    kind = ""
    try:
        kind = jax.devices()[0].device_kind.lower()
    except Exception:
        pass
    vmem_cap = None
    try:
        vmem_cap = int(getattr(pltpu.get_tpu_info(), "vmem_capacity_bytes", 0)) or None
    except Exception:
        vmem_cap = None
    if vmem_cap is None:
        vmem_cap = (64 << 20) if "7" in kind else (128 << 20)
    # v5e and older have no bf16 VALU/EUP: keep the stencil + GELU in f32
    # there; v6e / v7x run them in bf16 (~2x on the saturating VPU slot).
    older = any(t in kind for t in ("v2", "v3", "v4", "v5"))
    conv_dtype = jnp.float32 if older else jnp.bfloat16
    # ~28 MiB usable target on 64 MiB/TC parts (v7x), ~48 MiB on 128 MiB parts.
    vmem_limit = (28 << 20) if vmem_cap <= (64 << 20) else (48 << 20)
    return conv_dtype, vmem_limit


@functools.lru_cache(maxsize=1)
def _roll_is_jnp_like():
    """True/False: does pltpu.roll(shift=+1) move element i -> i+1 (jnp.roll
    semantics)?  None: sublane roll unusable -> concatenate fallback."""
    def probe(o_ref):
        o_ref[...] = pltpu.roll(
            jax.lax.broadcasted_iota(jnp.int32, (8, 128), 0), shift=1, axis=0)
    try:
        r = pl.pallas_call(
            probe, out_shape=jax.ShapeDtypeStruct((8, 128), jnp.int32))()
        r = jax.block_until_ready(r)
        return bool(int(r[1, 0]) == 0)
    except Exception:
        return None


def _pick_block_batch(B, N, Cin, Cp, Cop, cdt_bytes, vmem_limit):
    """Largest divisor of B whose per-step footprint fits the VMEM budget,
    targeting an MXU M dim of ~1-2K rows and >= 2 grid steps."""
    budget = int(vmem_limit * 0.85)
    # Bblk-independent bytes: weights (x2 pipeline buffers, bf16/conv dtype) +
    # per-image conv temporaries + slack.
    fixed = 2 * 2 * (Cin * Cp + Cp * Cop + 11 * Cp + Cop)
    fixed += 10 * N * Cp * cdt_bytes
    fixed += 2 << 20
    # bytes per image in the batch block
    per_img = (2 * N * Cin * 4          # x block (double buffered, f32)
               + 2 * N * Cop * 4        # out block (double buffered, f32)
               + N * Cp * cdt_bytes     # staged fc1 output
               + N * Cp * 2             # staged GELU output (bf16)
               + N * Cp * 4             # fc1 f32 result before staging
               + N * Cop * 4)           # fc2 f32 result before the store
    cap = max(1, (budget - fixed) // per_img)
    m_target = 2048 if vmem_limit >= (48 << 20) else 1024
    target = min(B, cap, max(1, -(-m_target // N)))
    if B >= 2:
        target = min(target, B // 2)    # >= 2 grid steps (pipelining / 2 TCs)
    target = max(1, int(target))
    best = 1
    for d in range(1, target + 1):
        if B % d == 0:
            best = d
    return best


def mixff_kernel(x_ref, w1_ref, b1_ref, wc_ref, bc_ref, w2_ref, b2_ref,
                 o_ref, h1_ref, acc_ref, g_ref, *,
                 H, W, Bblk, conv_dtype, use_roll, left_shift, right_shift):
    """Bblk images per grid step: fc1 + depthwise 3x3 conv + GELU + fc2."""
    Cp = w1_ref.shape[1]
    Cin = x_ref.shape[2]
    Cop = o_ref.shape[2]
    N = H * W
    cdt = conv_dtype

    # ---- fc1 (MXU, bf16 operands, f32 accumulation) ----
    x2d = x_ref[...].reshape(Bblk * N, Cin).astype(jnp.bfloat16)
    h1 = jnp.dot(x2d, w1_ref[...], preferred_element_type=jnp.float32)
    h1 = h1 + b1_ref[...]
    # Stage in VMEM scratch so the per-image loop below bounds the live set.
    h1_ref[...] = h1.reshape(Bblk, H, W, Cp).astype(cdt)

    # ---- hoisted per-grid-step constants for the conv ----
    wc = wc_ref[...]                                     # (9, Cp), conv dtype
    taps = [wc[i][None, None, :] for i in range(9)]      # (1, 1, Cp) views
    bias_c = bc_ref[...].reshape(1, 1, Cp)               # (1, 1, Cp)
    if use_roll:
        col = jax.lax.broadcasted_iota(jnp.int32, (1, W, Cp), 1)
        lmask = jnp.where(col > 0, 1.0, 0.0).astype(cdt)      # kill wrapped col 0
        rmask = jnp.where(col < W - 1, 1.0, 0.0).astype(cdt)  # kill wrapped col W-1

    # ---- depthwise 3x3 conv (VPU + XLU) + GELU, one image at a time ----
    def conv_one(b, carry):
        img = h1_ref[b]                                  # (H, W, Cp)
        if use_roll:
            # dx = -1/+1 neighbours: XLU sublane roll (different VLIW slot
            # from the VPU tap FMAs) + edge mask -> no relayout copies.
            left = pltpu.roll(img, shift=left_shift, axis=1) * lmask
            right = pltpu.roll(img, shift=right_shift, axis=1) * rmask
        else:
            zc = jnp.zeros((H, 1, Cp), cdt)
            left = jnp.concatenate([zc, img[:, :W - 1, :]], axis=1)
            right = jnp.concatenate([img[:, 1:, :], zc], axis=1)
        # Combine the three taps of each stencil row ...
        top = left * taps[0] + img * taps[1] + right * taps[2]
        mid = left * taps[3] + img * taps[4] + right * taps[5]
        bot = left * taps[6] + img * taps[7] + right * taps[8]
        # ... and resolve dy = -1/+1 with free outer-dim (row) slices.
        acc_ref[...] = mid
        if H > 1:
            acc_ref[1:, :, :] = acc_ref[1:, :, :] + top[:H - 1]
            acc_ref[:H - 1, :, :] = acc_ref[:H - 1, :, :] + bot[1:]
        g = _gelu_tanh(acc_ref[...] + bias_c)
        g_ref[b] = g.reshape(N, Cp).astype(jnp.bfloat16)
        return carry

    jax.lax.fori_loop(0, Bblk, conv_one, 0)

    # ---- fc2 (MXU, bf16 operands, f32 accumulation) ----
    y = jnp.dot(g_ref[...].reshape(Bblk * N, Cp), w2_ref[...],
                preferred_element_type=jnp.float32)
    y = y + b2_ref[...]
    # dropout_p == 0.0 -> identity (skipped)
    o_ref[...] = y.reshape(Bblk, N, Cop).astype(o_ref.dtype)


def mix_feedforward(x, params, h, w):
    """x: (B, N, C_in) with N == h*w.  Returns (B, N, C_out)."""
    w1, b1, wc, bc, w2, b2 = params
    B, N, Cin = x.shape
    Chid = w1.shape[1]
    Cout = w2.shape[1]
    assert N == h * w

    conv_dtype, vmem_limit = _conv_dtype_and_vmem_limit()

    # Lane-dense channel padding (zero pad -> numerically identical output);
    # matmul weights pre-cast to bf16 (halves weight DMA, no per-step casts).
    Cp = _round_up(Chid, LANE)
    Cop = _round_up(Cout, LANE)
    w1p = jnp.pad(w1, ((0, 0), (0, Cp - Chid))).astype(jnp.bfloat16)
    b1p = jnp.pad(b1, ((0, 0), (0, Cp - Chid)))
    wcp = jnp.pad(wc, ((0, 0), (0, Cp - Chid))).astype(conv_dtype)
    bcp = jnp.pad(bc, ((0, 0), (0, Cp - Chid))).astype(conv_dtype)
    w2p = jnp.pad(w2, ((0, Cp - Chid), (0, Cop - Cout))).astype(jnp.bfloat16)
    b2p = jnp.pad(b2, ((0, 0), (0, Cop - Cout)))

    cdt_bytes = jnp.dtype(conv_dtype).itemsize
    Bblk = _pick_block_batch(B, N, Cin, Cp, Cop, cdt_bytes, vmem_limit)
    grid = (B // Bblk,)

    roll_jnp = _roll_is_jnp_like()
    use_roll = roll_jnp is not None
    if use_roll and not roll_jnp:
        left_shift, right_shift = (w - 1) % max(w, 1), 1 % max(w, 1)
    else:
        left_shift, right_shift = 1 % max(w, 1), (w - 1) % max(w, 1)

    kernel = functools.partial(
        mixff_kernel, H=h, W=w, Bblk=Bblk, conv_dtype=conv_dtype,
        use_roll=use_roll, left_shift=left_shift, right_shift=right_shift)

    out = pl.pallas_call(
        kernel,
        out_shape=jax.ShapeDtypeStruct((B, N, Cop), x.dtype),
        grid_spec=pltpu.PrefetchScalarGridSpec(
            num_scalar_prefetch=0,
            grid=grid,
            in_specs=[
                pl.BlockSpec((Bblk, N, Cin), lambda g: (g, 0, 0)),   # x
                pl.BlockSpec((Cin, Cp), lambda g: (0, 0)),           # fc1 W (bf16)
                pl.BlockSpec((1, Cp), lambda g: (0, 0)),             # fc1 b (f32)
                pl.BlockSpec((9, Cp), lambda g: (0, 0)),             # dw-conv W
                pl.BlockSpec((1, Cp), lambda g: (0, 0)),             # dw-conv b
                pl.BlockSpec((Cp, Cop), lambda g: (0, 0)),           # fc2 W (bf16)
                pl.BlockSpec((1, Cop), lambda g: (0, 0)),            # fc2 b (f32)
            ],
            out_specs=pl.BlockSpec((Bblk, N, Cop), lambda g: (g, 0, 0)),
            scratch_shapes=[
                pltpu.VMEM((Bblk, h, w, Cp), conv_dtype),   # staged fc1 output
                pltpu.VMEM((h, w, Cp), conv_dtype),         # conv accumulator
                pltpu.VMEM((Bblk, N, Cp), jnp.bfloat16),    # staged GELU output
            ],
        ),
        compiler_params=pltpu.CompilerParams(
            dimension_semantics=("parallel",),
            vmem_limit_bytes=int(vmem_limit)),
    )(x, w1p, b1p, wcp, bcp, w2p, b2p)
    return out[..., :Cout]


def mix_feedforward_ref(x, params, h, w, conv_dtype):
    """Pure-JAX reference replicating the kernel's dtype path."""
    w1, b1, wc, bc, w2, b2 = params
    B, N, _ = x.shape
    C = w1.shape[1]
    bf16 = jnp.bfloat16
    h1 = jnp.dot(x.astype(bf16), w1.astype(bf16),
                 preferred_element_type=jnp.float32) + b1
    h1 = h1.reshape(B, h, w, C).astype(conv_dtype)
    wcd = wc.astype(conv_dtype)
    bcd = bc.astype(conv_dtype)
    taps = [wcd[i][None, None, None, :] for i in range(9)]
    zc = jnp.zeros((B, h, 1, C), conv_dtype)
    left = jnp.concatenate([zc, h1[:, :, :w - 1, :]], axis=2)
    right = jnp.concatenate([h1[:, :, 1:, :], zc], axis=2)
    top = left * taps[0] + h1 * taps[1] + right * taps[2]
    mid = left * taps[3] + h1 * taps[4] + right * taps[5]
    bot = left * taps[6] + h1 * taps[7] + right * taps[8]
    zr = jnp.zeros((B, 1, w, C), conv_dtype)
    acc = mid + jnp.concatenate([zr, top[:, :h - 1]], axis=1)
    acc = acc + jnp.concatenate([bot[:, 1:], zr], axis=1)
    acc = acc + bcd[0][None, None, None, :]
    g = _gelu_tanh(acc).reshape(B, h * w, C).astype(bf16)
    return jnp.dot(g, w2.astype(bf16), preferred_element_type=jnp.float32) + b2


if __name__ == "__main__":
    # Small shapes consistent with the module's forward.
    B = 2
    H = W = 8
    N = H * W
    in_features = 32
    hidden_features = 64
    out_features = 32

    keys = jax.random.split(jax.random.PRNGKey(0), 8)

    # PyTorch Linear weight is (out, in); materialized here in transposed
    # (in, out) form for x @ W.  Depthwise conv weight (C, 1, 3, 3) is stored
    # as (9 taps, C) channels-last (tap index = dy * 3 + dx).
    w1 = jax.random.normal(keys[0], (in_features, hidden_features), jnp.float32) * 0.1
    b1 = jax.random.normal(keys[1], (1, hidden_features), jnp.float32) * 0.1
    wc = jax.random.normal(keys[2], (9, hidden_features), jnp.float32) * 0.1
    bc = jax.random.normal(keys[3], (1, hidden_features), jnp.float32) * 0.1
    w2 = jax.random.normal(keys[4], (hidden_features, out_features), jnp.float32) * 0.1
    b2 = jax.random.normal(keys[5], (1, out_features), jnp.float32) * 0.1
    params = (w1, b1, wc, bc, w2, b2)

    x = jax.random.normal(keys[6], (B, N, in_features), jnp.float32)

    out = jax.block_until_ready(mix_feedforward(x, params, H, W))

    conv_dtype, _ = _conv_dtype_and_vmem_limit()
    ref = mix_feedforward_ref(x, params, H, W, conv_dtype)
    assert out.shape == (B, N, out_features)
    # f32 conv path (v5e and older) is a near-exact match; the bf16 conv/GELU
    # path (v6e/v7x) gets a bf16-sized tolerance.
    tol = 2e-3 if conv_dtype == jnp.float32 else 3e-2
    err = float(jnp.max(jnp.abs(out - ref)))
    assert jnp.allclose(out, ref, rtol=tol, atol=tol), f"max abs err {err}"

    print("KERNEL_OK")
</pallas_src>

<mosaic_0001>
module attributes {stable_mosaic.version = 11 : i64} {
  func.func @mixff_kernel(%arg0: i32, %arg1: memref<1x64x32xf32, #tpu.memory_space<vmem>>, %arg2: memref<32x128xbf16, #tpu.memory_space<vmem>>, %arg3: memref<1x128xf32, #tpu.memory_space<vmem>>, %arg4: memref<9x128xbf16, #tpu.memory_space<vmem>>, %arg5: memref<1x128xbf16, #tpu.memory_space<vmem>>, %arg6: memref<128x128xbf16, #tpu.memory_space<vmem>>, %arg7: memref<1x128xf32, #tpu.memory_space<vmem>>, %arg8: memref<1x64x128xf32, #tpu.memory_space<vmem>>, %arg9: memref<1x8x8x128xbf16, #tpu.memory_space<vmem>>, %arg10: memref<8x8x128xbf16, #tpu.memory_space<vmem>>, %arg11: memref<1x64x128xbf16, #tpu.memory_space<vmem>>) attributes {dimension_semantics = [#tpu.dimension_semantics<parallel>], iteration_bounds = array<i64: 2>, scalar_prefetch = 0 : i64, scratch_operands = 3 : i64, tpu.core_type = #tpu.core_type<tc>, window_params = [{transform_indices = @transform_0, window_bounds = array<i64: 1, 64, 32>}, {pipeline_mode = #tpu.pipeline_mode<synchronous>, transform_indices = @transform_1, window_bounds = array<i64: 32, 128>}, {pipeline_mode = #tpu.pipeline_mode<synchronous>, transform_indices = @transform_2, window_bounds = array<i64: 1, 128>}, {pipeline_mode = #tpu.pipeline_mode<synchronous>, transform_indices = @transform_3, window_bounds = array<i64: 9, 128>}, {pipeline_mode = #tpu.pipeline_mode<synchronous>, transform_indices = @transform_4, window_bounds = array<i64: 1, 128>}, {pipeline_mode = #tpu.pipeline_mode<synchronous>, transform_indices = @transform_5, window_bounds = array<i64: 128, 128>}, {pipeline_mode = #tpu.pipeline_mode<synchronous>, transform_indices = @transform_6, window_bounds = array<i64: 1, 128>}, {transform_indices = @transform_7, window_bounds = array<i64: 1, 64, 128>}]} {
    %c0 = arith.constant 0 : index
    %c0_0 = arith.constant 0 : index
    %c0_1 = arith.constant 0 : index
    %0 = vector.load %arg1[%c0, %c0_0, %c0_1] : memref<1x64x32xf32, #tpu.memory_space<vmem>>, vector<1x64x32xf32>
    %1 = vector.shape_cast %0 : vector<1x64x32xf32> to vector<64x32xf32>
    %2 = arith.truncf %1 : vector<64x32xf32> to vector<64x32xbf16>
    %c0_2 = arith.constant 0 : index
    %c0_3 = arith.constant 0 : index
    %3 = vector.load %arg2[%c0_2, %c0_3] : memref<32x128xbf16, #tpu.memory_space<vmem>>, vector<32x128xbf16>
    %cst = arith.constant dense<0.000000e+00> : vector<64x128xf32>
    %4 = tpu.matmul %2, %3, %cst {dimension_numbers = #tpu.dot_dimension_numbers<[1], [0], [0], [1], [0, 0, 1, 1], [], []>} : vector<64x32xbf16>, vector<32x128xbf16>, vector<64x128xf32> -> vector<64x128xf32>
    %c0_4 = arith.constant 0 : index
    %c0_5 = arith.constant 0 : index
    %5 = vector.load %arg3[%c0_4, %c0_5] : memref<1x128xf32, #tpu.memory_space<vmem>>, vector<1x128xf32>
    %6 = vector.broadcast %5 : vector<1x128xf32> to vector<64x128xf32>
    %7 = arith.addf %4, %6 : vector<64x128xf32>
    %8 = vector.shape_cast %7 : vector<64x128xf32> to vector<1x8x8x128xf32>
    %9 = arith.truncf %8 : vector<1x8x8x128xf32> to vector<1x8x8x128xbf16>
    %c0_6 = arith.constant 0 : index
    %c0_7 = arith.constant 0 : index
    %c0_8 = arith.constant 0 : index
    %c0_9 = arith.constant 0 : index
    %10 = vector.load %arg9[%c0_6, %c0_7, %c0_8, %c0_9] : memref<1x8x8x128xbf16, #tpu.memory_space<vmem>>, vector<1x8x8x128xbf16>
    tpu.vector_store %arg9[%c0_6, %c0_7, %c0_8, %c0_9], %9 {strides = array<i32>} : memref<1x8x8x128xbf16, #tpu.memory_space<vmem>>, vector<1x8x8x128xbf16>,
    %c0_10 = arith.constant 0 : index
    %c0_11 = arith.constant 0 : index
    %11 = vector.load %arg4[%c0_10, %c0_11] : memref<9x128xbf16, #tpu.memory_space<vmem>>, vector<9x128xbf16>
    %12 = vector.extract_strided_slice %11 {offsets = [0, 0], sizes = [1, 128], strides = [1, 1]} : vector<9x128xbf16> to vector<1x128xbf16>
    %13 = vector.shape_cast %12 : vector<1x128xbf16> to vector<128xbf16>
    %14 = vector.shape_cast %13 : vector<128xbf16> to vector<1x1x128xbf16>
    %15 = vector.extract_strided_slice %11 {offsets = [1, 0], sizes = [1, 128], strides = [1, 1]} : vector<9x128xbf16> to vector<1x128xbf16>
    %16 = vector.shape_cast %15 : vector<1x128xbf16> to vector<128xbf16>
    %17 = vector.shape_cast %16 : vector<128xbf16> to vector<1x1x128xbf16>
    %18 = vector.extract_strided_slice %11 {offsets = [2, 0], sizes = [1, 128], strides = [1, 1]} : vector<9x128xbf16> to vector<1x128xbf16>
    %19 = vector.shape_cast %18 : vector<1x128xbf16> to vector<128xbf16>
    %20 = vector.shape_cast %19 : vector<128xbf16> to vector<1x1x128xbf16>
    %21 = vector.extract_strided_slice %11 {offsets = [3, 0], sizes = [1, 128], strides = [1, 1]} : vector<9x128xbf16> to vector<1x128xbf16>
    %22 = vector.shape_cast %21 : vector<1x128xbf16> to vector<128xbf16>
    %23 = vector.shape_cast %22 : vector<128xbf16> to vector<1x1x128xbf16>
    %24 = vector.extract_strided_slice %11 {offsets = [4, 0], sizes = [1, 128], strides = [1, 1]} : vector<9x128xbf16> to vector<1x128xbf16>
    %25 = vector.shape_cast %24 : vector<1x128xbf16> to vector<128xbf16>
    %26 = vector.shape_cast %25 : vector<128xbf16> to vector<1x1x128xbf16>
    %27 = vector.extract_strided_slice %11 {offsets = [5, 0], sizes = [1, 128], strides = [1, 1]} : vector<9x128xbf16> to vector<1x128xbf16>
    %28 = vector.shape_cast %27 : vector<1x128xbf16> to vector<128xbf16>
    %29 = vector.shape_cast %28 : vector<128xbf16> to vector<1x1x128xbf16>
    %30 = vector.extract_strided_slice %11 {offsets = [6, 0], sizes = [1, 128], strides = [1, 1]} : vector<9x128xbf16> to vector<1x128xbf16>
    %31 = vector.shape_cast %30 : vector<1x128xbf16> to vector<128xbf16>
    %32 = vector.shape_cast %31 : vector<128xbf16> to vector<1x1x128xbf16>
    %33 = vector.extract_strided_slice %11 {offsets = [7, 0], sizes = [1, 128], strides = [1, 1]} : vector<9x128xbf16> to vector<1x128xbf16>
    %34 = vector.shape_cast %33 : vector<1x128xbf16> to vector<128xbf16>
    %35 = vector.shape_cast %34 : vector<128xbf16> to vector<1x1x128xbf16>
    %36 = vector.extract_strided_slice %11 {offsets = [8, 0], sizes = [1, 128], strides = [1, 1]} : vector<9x128xbf16> to vector<1x128xbf16>
    %37 = vector.shape_cast %36 : vector<1x128xbf16> to vector<128xbf16>
    %38 = vector.shape_cast %37 : vector<128xbf16> to vector<1x1x128xbf16>
    %c0_12 = arith.constant 0 : index
    %c0_13 = arith.constant 0 : index
    %39 = vector.load %arg5[%c0_12, %c0_13] : memref<1x128xbf16, #tpu.memory_space<vmem>>, vector<1x128xbf16>
    %40 = vector.shape_cast %39 : vector<1x128xbf16> to vector<1x1x128xbf16>
    %c0_i32 = arith.constant 0 : i32
    %41 = arith.index_cast %c0_i32 : i32 to index
    %c0_14 = arith.constant 0 : index
    %c0_15 = arith.constant 0 : index
    %c0_16 = arith.constant 0 : index
    %42 = vector.load %arg9[%41, %c0_14, %c0_15, %c0_16] : memref<1x8x8x128xbf16, #tpu.memory_space<vmem>>, vector<1x8x8x128xbf16>
    %43 = vector.shape_cast %42 : vector<1x8x8x128xbf16> to vector<8x8x128xbf16>
    %cst_17 = arith.constant 0.000000e+00 : bf16
    %44 = vector.broadcast %cst_17 : bf16 to vector<8x1x128xbf16>
    %45 = vector.extract_strided_slice %43 {offsets = [0, 0, 0], sizes = [8, 7, 128], strides = [1, 1, 1]} : vector<8x8x128xbf16> to vector<8x7x128xbf16>
    %46 = tpu.concatenate %44, %45 in 1 : vector<8x1x128xbf16>, vector<8x7x128xbf16> -> vector<8x8x128xbf16>
    %47 = vector.extract_strided_slice %43 {offsets = [0, 1, 0], sizes = [8, 7, 128], strides = [1, 1, 1]} : vector<8x8x128xbf16> to vector<8x7x128xbf16>
    %48 = tpu.concatenate %47, %44 in 1 : vector<8x7x128xbf16>, vector<8x1x128xbf16> -> vector<8x8x128xbf16>
    %49 = vector.broadcast %14 : vector<1x1x128xbf16> to vector<8x8x128xbf16>
    %50 = arith.mulf %46, %49 : vector<8x8x128xbf16>
    %51 = vector.broadcast %17 : vector<1x1x128xbf16> to vector<8x8x128xbf16>
    %52 = arith.mulf %43, %51 : vector<8x8x128xbf16>
    %53 = arith.addf %50, %52 : vector<8x8x128xbf16>
    %54 = vector.broadcast %20 : vector<1x1x128xbf16> to vector<8x8x128xbf16>
    %55 = arith.mulf %48, %54 : vector<8x8x128xbf16>
    %56 = arith.addf %53, %55 : vector<8x8x128xbf16>
    %57 = vector.broadcast %23 : vector<1x1x128xbf16> to vector<8x8x128xbf16>
    %58 = arith.mulf %46, %57 : vector<8x8x128xbf16>
    %59 = vector.broadcast %26 : vector<1x1x128xbf16> to vector<8x8x128xbf16>
    %60 = arith.mulf %43, %59 : vector<8x8x128xbf16>
    %61 = arith.addf %58, %60 : vector<8x8x128xbf16>
    %62 = vector.broadcast %29 : vector<1x1x128xbf16> to vector<8x8x128xbf16>
    %63 = arith.mulf %48, %62 : vector<8x8x128xbf16>
    %64 = arith.addf %61, %63 : vector<8x8x128xbf16>
    %65 = vector.broadcast %32 : vector<1x1x128xbf16> to vector<8x8x128xbf16>
    %66 = arith.mulf %46, %65 : vector<8x8x128xbf16>
    %67 = vector.broadcast %35 : vector<1x1x128xbf16> to vector<8x8x128xbf16>
    %68 = arith.mulf %43, %67 : vector<8x8x128xbf16>
    %69 = arith.addf %66, %68 : vector<8x8x128xbf16>
    %70 = vector.broadcast %38 : vector<1x1x128xbf16> to vector<8x8x128xbf16>
    %71 = arith.mulf %48, %70 : vector<8x8x128xbf16>
    %72 = arith.addf %69, %71 : vector<8x8x128xbf16>
    %c0_18 = arith.constant 0 : index
    %c0_19 = arith.constant 0 : index
    %c0_20 = arith.constant 0 : index
    %73 = vector.load %arg10[%c0_18, %c0_19, %c0_20] : memref<8x8x128xbf16, #tpu.memory_space<vmem>>, vector<8x8x128xbf16>
    tpu.vector_store %arg10[%c0_18, %c0_19, %c0_20], %64 {strides = array<i32>} : memref<8x8x128xbf16, #tpu.memory_space<vmem>>, vector<8x8x128xbf16>,
    %c1 = arith.constant 1 : index
    %c0_21 = arith.constant 0 : index
    %c0_22 = arith.constant 0 : index
    %74 = vector.load %arg10[%c1, %c0_21, %c0_22] : memref<8x8x128xbf16, #tpu.memory_space<vmem>>, vector<7x8x128xbf16>
    %75 = vector.extract_strided_slice %56 {offsets = [0, 0, 0], sizes = [7, 8, 128], strides = [1, 1, 1]} : vector<8x8x128xbf16> to vector<7x8x128xbf16>
    %76 = arith.addf %74, %75 : vector<7x8x128xbf16>
    %c1_23 = arith.constant 1 : index
    %c0_24 = arith.constant 0 : index
    %c0_25 = arith.constant 0 : index
    %77 = vector.load %arg10[%c1_23, %c0_24, %c0_25] : memref<8x8x128xbf16, #tpu.memory_space<vmem>>, vector<7x8x128xbf16>
    tpu.vector_store %arg10[%c1_23, %c0_24, %c0_25], %76 {strides = array<i32>} : memref<8x8x128xbf16, #tpu.memory_space<vmem>>, vector<7x8x128xbf16>,
    %c0_26 = arith.constant 0 : index
    %c0_27 = arith.constant 0 : index
    %c0_28 = arith.constant 0 : index
    %78 = vector.load %arg10[%c0_26, %c0_27, %c0_28] : memref<8x8x128xbf16, #tpu.memory_space<vmem>>, vector<7x8x128xbf16>
    %79 = vector.extract_strided_slice %72 {offsets = [1, 0, 0], sizes = [7, 8, 128], strides = [1, 1, 1]} : vector<8x8x128xbf16> to vector<7x8x128xbf16>
    %80 = arith.addf %78, %79 : vector<7x8x128xbf16>
    %c0_29 = arith.constant 0 : index
    %c0_30 = arith.constant 0 : index
    %c0_31 = arith.constant 0 : index
    %81 = vector.load %arg10[%c0_29, %c0_30, %c0_31] : memref<8x8x128xbf16, #tpu.memory_space<vmem>>, vector<7x8x128xbf16>
    tpu.vector_store %arg10[%c0_29, %c0_30, %c0_31], %80 {strides = array<i32>} : memref<8x8x128xbf16, #tpu.memory_space<vmem>>, vector<7x8x128xbf16>,
    %c0_32 = arith.constant 0 : index
    %c0_33 = arith.constant 0 : index
    %c0_34 = arith.constant 0 : index
    %82 = vector.load %arg10[%c0_32, %c0_33, %c0_34] : memref<8x8x128xbf16, #tpu.memory_space<vmem>>, vector<8x8x128xbf16>
    %83 = vector.broadcast %40 : vector<1x1x128xbf16> to vector<8x8x128xbf16>
    %84 = arith.addf %82, %83 : vector<8x8x128xbf16>
    %cst_35 = arith.constant 5.000000e-01 : bf16
    %85 = vector.broadcast %cst_35 : bf16 to vector<8x8x128xbf16>
    %86 = arith.mulf %85, %84 : vector<8x8x128xbf16>
    %cst_36 = arith.constant 4.467770e-02 : bf16
    %87 = vector.broadcast %cst_36 : bf16 to vector<8x8x128xbf16>
    %88 = arith.mulf %87, %84 : vector<8x8x128xbf16>
    %89 = arith.mulf %88, %84 : vector<8x8x128xbf16>
    %90 = arith.mulf %89, %84 : vector<8x8x128xbf16>
    %91 = arith.addf %84, %90 : vector<8x8x128xbf16>
    %cst_37 = arith.constant 7.968750e-01 : bf16
    %92 = vector.broadcast %cst_37 : bf16 to vector<8x8x128xbf16>
    %93 = arith.mulf %92, %91 : vector<8x8x128xbf16>
    %94 = math.tanh %93 : vector<8x8x128xbf16>
    %cst_38 = arith.constant 1.000000e+00 : bf16
    %95 = vector.broadcast %cst_38 : bf16 to vector<8x8x128xbf16>
    %96 = arith.addf %95, %94 : vector<8x8x128xbf16>
    %97 = arith.mulf %86, %96 : vector<8x8x128xbf16>
    %98 = vector.shape_cast %97 : vector<8x8x128xbf16> to vector<64x128xbf16>
    %99 = arith.index_cast %c0_i32 : i32 to index
    %c0_39 = arith.constant 0 : index
    %c0_40 = arith.constant 0 : index
    %100 = vector.load %arg11[%99, %c0_39, %c0_40] : memref<1x64x128xbf16, #tpu.memory_space<vmem>>, vector<1x64x128xbf16>
    %101 = vector.shape_cast %100 : vector<1x64x128xbf16> to vector<64x128xbf16>
    %102 = vector.shape_cast %98 : vector<64x128xbf16> to vector<1x64x128xbf16>
    tpu.vector_store %arg11[%99, %c0_39, %c0_40], %102 {strides = array<i32>} : memref<1x64x128xbf16, #tpu.memory_space<vmem>>, vector<1x64x128xbf16>,
    %c1_i32 = arith.constant 1 : i32
    %c0_41 = arith.constant 0 : index
    %c0_42 = arith.constant 0 : index
    %c0_43 = arith.constant 0 : index
    %103 = vector.load %arg11[%c0_41, %c0_42, %c0_43] : memref<1x64x128xbf16, #tpu.memory_space<vmem>>, vector<1x64x128xbf16>
    %104 = vector.shape_cast %103 : vector<1x64x128xbf16> to vector<64x128xbf16>
    %c0_44 = arith.constant 0 : index
    %c0_45 = arith.constant 0 : index
    %105 = vector.load %arg6[%c0_44, %c0_45] : memref<128x128xbf16, #tpu.memory_space<vmem>>, vector<128x128xbf16>
    %cst_46 = arith.constant dense<0.000000e+00> : vector<64x128xf32>
    %106 = tpu.matmul %104, %105, %cst_46 {dimension_numbers = #tpu.dot_dimension_numbers<[1], [0], [0], [1], [0, 0, 1, 1], [], []>} : vector<64x128xbf16>, vector<128x128xbf16>, vector<64x128xf32> -> vector<64x128xf32>
    %c0_47 = arith.constant 0 : index
    %c0_48 = arith.constant 0 : index
    %107 = vector.load %arg7[%c0_47, %c0_48] : memref<1x128xf32, #tpu.memory_space<vmem>>, vector<1x128xf32>
    %108 = vector.broadcast %107 : vector<1x128xf32> to vector<64x128xf32>
    %109 = arith.addf %106, %108 : vector<64x128xf32>
    %110 = vector.shape_cast %109 : vector<64x128xf32> to vector<1x64x128xf32>
    %c0_49 = arith.constant 0 : index
    %c0_50 = arith.constant 0 : index
    %c0_51 = arith.constant 0 : index
    %111 = vector.load %arg8[%c0_49, %c0_50, %c0_51] : memref<1x64x128xf32, #tpu.memory_space<vmem>>, vector<1x64x128xf32>
    tpu.vector_store %arg8[%c0_49, %c0_50, %c0_51], %110 {strides = array<i32>} : memref<1x64x128xf32, #tpu.memory_space<vmem>>, vector<1x64x128xf32>,
    return
  }
  func.func @transform_0(%arg0: i32) -> (i32, i32, i32) {
    %c0_i32 = arith.constant 0 : i32
    %c0_i32_0 = arith.constant 0 : i32
    %c0_i32_1 = arith.constant 0 : i32
    return %arg0, %c0_i32, %c0_i32_0 : i32, i32, i32
  }
  func.func @transform_1(%arg0: i32) -> (i32, i32) {
    %c0_i32 = arith.constant 0 : i32
    %c0_i32_0 = arith.constant 0 : i32
    %c0_i32_1 = arith.constant 0 : i32
    return %c0_i32, %c0_i32_0 : i32, i32
  }
  func.func @transform_2(%arg0: i32) -> (i32, i32) {
    %c0_i32 = arith.constant 0 : i32
    %c0_i32_0 = arith.constant 0 : i32
    %c0_i32_1 = arith.constant 0 : i32
    return %c0_i32, %c0_i32_0 : i32, i32
  }
  func.func @transform_3(%arg0: i32) -> (i32, i32) {
    %c0_i32 = arith.constant 0 : i32
    %c0_i32_0 = arith.constant 0 : i32
    %c0_i32_1 = arith.constant 0 : i32
    return %c0_i32, %c0_i32_0 : i32, i32
  }
  func.func @transform_4(%arg0: i32) -> (i32, i32) {
    %c0_i32 = arith.constant 0 : i32
    %c0_i32_0 = arith.constant 0 : i32
    %c0_i32_1 = arith.constant 0 : i32
    return %c0_i32, %c0_i32_0 : i32, i32
  }
  func.func @transform_5(%arg0: i32) -> (i32, i32) {
    %c0_i32 = arith.constant 0 : i32
    %c0_i32_0 = arith.constant 0 : i32
    %c0_i32_1 = arith.constant 0 : i32
    return %c0_i32, %c0_i32_0 : i32, i32
  }
  func.func @transform_6(%arg0: i32) -> (i32, i32) {
    %c0_i32 = arith.constant 0 : i32
    %c0_i32_0 = arith.constant 0 : i32
    %c0_i32_1 = arith.constant 0 : i32
    return %c0_i32, %c0_i32_0 : i32, i32
  }
  func.func @transform_7(%arg0: i32) -> (i32, i32, i32) {
    %c0_i32 = arith.constant 0 : i32
    %c0_i32_0 = arith.constant 0 : i32
    %c0_i32_1 = arith.constant 0 : i32
    return %arg0, %c0_i32, %c0_i32_0 : i32, i32, i32
  }
}

</mosaic_0001>

<llo_original>
// kernel: tpu_custom_call.1
$region0: #{tpu_custom_call.1}
  #allocation0 [shape = 'u32[]', space=smem, size = 0x4, offset = 0x4, fixed_abs, tag = 'smem constant byte address 0x4 - core index']
  #allocation1 [shape = 'u32[144,128]{1,0:T(1,128)}', space=vmem, size = 0x12000, scoped, tag = 'internal scratch']
  #allocation2 [shape = 'bf16[1,8,8,128]{3,2,1,0:T(8,128)(2,1)}', space=vmem, size = 0x4000, scoped, tag = 'scratch operand']
  #allocation3 [shape = 'bf16[8,8,128]{2,1,0:T(8,128)(2,1)}', space=vmem, size = 0x4000, scoped, tag = 'scratch operand']
  #allocation4 [shape = 'bf16[1,64,128]{2,1,0:T(16,128)(2,1)}', space=vmem, size = 0x4000, scoped, tag = 'scratch operand']
  %s0 = inlined_call_operand.vmem [shape: f32[2,64,32], index: 0, kind: input, shape index: {}]
  %s1 = inlined_call_operand.vmem [shape: bf16[32,128], index: 1, kind: input, shape index: {}]
  %s2 = inlined_call_operand.vmem [shape: f32[1,128], index: 2, kind: input, shape index: {}]
  %s3 = inlined_call_operand.vmem [shape: bf16[9,128], index: 3, kind: input, shape index: {}]
  %s4 = inlined_call_operand.vmem [shape: bf16[1,128], index: 4, kind: input, shape index: {}]
  %s5 = inlined_call_operand.vmem [shape: bf16[128,128], index: 5, kind: input, shape index: {}]
  %s6 = inlined_call_operand.vmem [shape: f32[1,128], index: 6, kind: input, shape index: {}]
  %s7 = inlined_call_operand.hbm [shape: f32[2,64,128], index: 7, kind: output, shape index: {}]
  %s8 = sld [smem:[#allocation0]]
  $region61: #{tpu_custom_call.1} parent=0
    _
  %s10 = ssub.s32 1, %s8
  %s11 = scalar_select 0, %s10, %s8
  $region1: #{tpu_custom_call.1} parent=0
    #allocation5 [shape = 'u8[65536]{0}', space=vmem, size = 0x10000, scoped, tag = 'output window, operand 0']
    #allocation6 [shape = 's32[2]{0}', space=sflag, size = 0x8, scoped, tag = 'scoped memory for tpu_custom_call.1']
    %12 = vsyncpa [#allocation6], 0
    %s13 = scalar_lea.sflag [#allocation6], 1
    %14 = vsyncpa %s13, 0
    loop: start=0, step=1, limit=4
    $region2: #{tpu_custom_call.1} parent=1 // loop_pre_header
      _
    $region3: #{tpu_custom_call.1} parent=1 // loop_header
      %s16 = sphi 0, %s20
      %p17 = scmp.ge.s32.totalorder %s16, 4
      %s26 = sphi 0, %s28
      %s29 = sphi 0, %s26
      %s30 = sphi 0, %s29
      %s46 = sphi 0, %s30
      %s50 = sphi 0, %s50
      %s52 = sphi 0, %s50
      %s53 = sphi 0, %s52
      %s67 = sphi 0, %s53
      %s71 = sphi 0, %s71
      %s73 = sphi 0, %s71
      %s74 = sphi 0, %s73
      %s88 = sphi 0, %s74
      %s92 = sphi 0, %s92
      %s94 = sphi 0, %s92
      %s95 = sphi 0, %s94
      %s109 = sphi 0, %s95
      %s113 = sphi 0, %s113
      %s115 = sphi 0, %s113
      %s116 = sphi 0, %s115
      %s130 = sphi 0, %s116
      %s134 = sphi 0, %s134
      %s136 = sphi 0, %s134
      %s137 = sphi 0, %s136
      %s151 = sphi 0, %s137
      %s155 = sphi 0, %s155
      %s157 = sphi 0, %s155
      %s158 = sphi 0, %s157
      %s172 = sphi 0, %s158
      %s178 = sphi 0, %s180
      %s181 = sphi 0, %s178
      %s182 = sphi 0, %s181
      %s198 = sphi 0, %s182
    $region4: #{tpu_custom_call.1} parent=1 // loop_header_branch
      %19 = sbr.rel (%p17) target = $region8
    $region5: #{tpu_custom_call.1} parent=1 // loop_body
      %s21 = ssub.s32 %s16, 1
      %s22 = ssub.s32 %s16, 2
      %s23 = sadd.s32 %s16, 1
      %s24 = ssub.s32 %s16, %s23
      %p25 = scmp.eq.s32.totalorder %s24, 0
      %s27 = sadd.s32 %s26, 1
      %s28 = scalar_select %p25, %s26, %s27
      %p31 = pneg %p25
      %p32 = scmp.eq.s32.totalorder %s16, 1
      %p33 = por %p31, %p32
      %p34 = scmp.ne.s32.totalorder %s26, %s29
      %p35 = scmp.eq.s32.totalorder %s16, 0
      %p36 = por %p34, %p35
      %p37 = scmp.ne.s32.totalorder %s26, %s29
      %p38 = scmp.eq.s32.totalorder %s21, 1
      %p39 = por %p37, %p38
      %p40 = scmp.ne.s32.totalorder %s29, %s30
      %p41 = scmp.eq.s32.totalorder %s21, 0
      %p42 = por %p40, %p41
      %p43 = scmp.ne.s32.totalorder %s29, %s30
      %p44 = scmp.eq.s32.totalorder %s22, 1
      %p45 = por %p43, %p44
      %p47 = scmp.ne.s32.totalorder %s30, %s46
      %p48 = scmp.eq.s32.totalorder %s22, 0
      %p49 = por %p47, %p48
      %s51 = sadd.s32 %s50, 1
      %p54 = scmp.eq.s32.totalorder %s16, 1
      %p55 = scmp.ne.s32.totalorder %s50, %s52
      %p56 = scmp.eq.s32.totalorder %s16, 0
      %p57 = por %p55, %p56
      %p58 = scmp.ne.s32.totalorder %s50, %s52
      %p59 = scmp.eq.s32.totalorder %s21, 1
      %p60 = por %p58, %p59
      %p61 = scmp.ne.s32.totalorder %s52, %s53
      %p62 = scmp.eq.s32.totalorder %s21, 0
      %p63 = por %p61, %p62
      %p64 = scmp.ne.s32.totalorder %s52, %s53
      %p65 = scmp.eq.s32.totalorder %s22, 1
      %p66 = por %p64, %p65
      %p68 = scmp.ne.s32.totalorder %s53, %s67
      %p69 = scmp.eq.s32.totalorder %s22, 0
      %p70 = por %p68, %p69
      %s72 = sadd.s32 %s71, 1
      %p75 = scmp.eq.s32.totalorder %s16, 1
      %p76 = scmp.ne.s32.totalorder %s71, %s73
      %p77 = scmp.eq.s32.totalorder %s16, 0
      %p78 = por %p76, %p77
      %p79 = scmp.ne.s32.totalorder %s71, %s73
      %p80 = scmp.eq.s32.totalorder %s21, 1
      %p81 = por %p79, %p80
      %p82 = scmp.ne.s32.totalorder %s73, %s74
      %p83 = scmp.eq.s32.totalorder %s21, 0
      %p84 = por %p82, %p83
      %p85 = scmp.ne.s32.totalorder %s73, %s74
      %p86 = scmp.eq.s32.totalorder %s22, 1
      %p87 = por %p85, %p86
      %p89 = scmp.ne.s32.totalorder %s74, %s88
      %p90 = scmp.eq.s32.totalorder %s22, 0
      %p91 = por %p89, %p90
      %s93 = sadd.s32 %s92, 1
      %p96 = scmp.eq.s32.totalorder %s16, 1
      %p97 = scmp.ne.s32.totalorder %s92, %s94
      %p98 = scmp.eq.s32.totalorder %s16, 0
      %p99 = por %p97, %p98
      %p100 = scmp.ne.s32.totalorder %s92, %s94
      %p101 = scmp.eq.s32.totalorder %s21, 1
      %p102 = por %p100, %p101
      %p103 = scmp.ne.s32.totalorder %s94, %s95
      %p104 = scmp.eq.s32.totalorder %s21, 0
      %p105 = por %p103, %p104
      %p106 = scmp.ne.s32.totalorder %s94, %s95
      %p107 = scmp.eq.s32.totalorder %s22, 1
      %p108 = por %p106, %p107
      %p110 = scmp.ne.s32.totalorder %s95, %s109
      %p111 = scmp.eq.s32.totalorder %s22, 0
      %p112 = por %p110, %p111
      %s114 = sadd.s32 %s113, 1
      %p117 = scmp.eq.s32.totalorder %s16, 1
      %p118 = scmp.ne.s32.totalorder %s113, %s115
      %p119 = scmp.eq.s32.totalorder %s16, 0
      %p120 = por %p118, %p119
      %p121 = scmp.ne.s32.totalorder %s113, %s115
      %p122 = scmp.eq.s32.totalorder %s21, 1
      %p123 = por %p121, %p122
      %p124 = scmp.ne.s32.totalorder %s115, %s116
      %p125 = scmp.eq.s32.totalorder %s21, 0
      %p126 = por %p124, %p125
      %p127 = scmp.ne.s32.totalorder %s115, %s116
      %p128 = scmp.eq.s32.totalorder %s22, 1
      %p129 = por %p127, %p128
      %p131 = scmp.ne.s32.totalorder %s116, %s130
      %p132 = scmp.eq.s32.totalorder %s22, 0
      %p133 = por %p131, %p132
      %s135 = sadd.s32 %s134, 1
      %p138 = scmp.eq.s32.totalorder %s16, 1
      %p139 = scmp.ne.s32.totalorder %s134, %s136
      %p140 = scmp.eq.s32.totalorder %s16, 0
      %p141 = por %p139, %p140
      %p142 = scmp.ne.s32.totalorder %s134, %s136
      %p143 = scmp.eq.s32.totalorder %s21, 1
      %p144 = por %p142, %p143
      %p145 = scmp.ne.s32.totalorder %s136, %s137
      %p146 = scmp.eq.s32.totalorder %s21, 0
      %p147 = por %p145, %p146
      %p148 = scmp.ne.s32.totalorder %s136, %s137
      %p149 = scmp.eq.s32.totalorder %s22, 1
      %p150 = por %p148, %p149
      %p152 = scmp.ne.s32.totalorder %s137, %s151
      %p153 = scmp.eq.s32.totalorder %s22, 0
      %p154 = por %p152, %p153
      %s156 = sadd.s32 %s155, 1
      %p159 = scmp.eq.s32.totalorder %s16, 1
      %p160 = scmp.ne.s32.totalorder %s155, %s157
      %p161 = scmp.eq.s32.totalorder %s16, 0
      %p162 = por %p160, %p161
      %p163 = scmp.ne.s32.totalorder %s155, %s157
      %p164 = scmp.eq.s32.totalorder %s21, 1
      %p165 = por %p163, %p164
      %p166 = scmp.ne.s32.totalorder %s157, %s158
      %p167 = scmp.eq.s32.totalorder %s21, 0
      %p168 = por %p166, %p167
      %p169 = scmp.ne.s32.totalorder %s157, %s158
      %p170 = scmp.eq.s32.totalorder %s22, 1
      %p171 = por %p169, %p170
      %p173 = scmp.ne.s32.totalorder %s158, %s172
      %p174 = scmp.eq.s32.totalorder %s22, 0
      %p175 = por %p173, %p174
      %s176 = ssub.s32 %s16, %s23
      %p177 = scmp.eq.s32.totalorder %s176, 0
      %s179 = sadd.s32 %s178, 1
      %s180 = scalar_select %p177, %s178, %s179
      %p183 = pneg %p177
      %p184 = scmp.eq.s32.totalorder %s16, 1
      %p185 = por %p183, %p184
      %p186 = scmp.ne.s32.totalorder %s178, %s181
      %p187 = scmp.eq.s32.totalorder %s16, 0
      %p188 = por %p186, %p187
      %p189 = scmp.ne.s32.totalorder %s178, %s181
      %p190 = scmp.eq.s32.totalorder %s21, 1
      %p191 = por %p189, %p190
      %p192 = scmp.ne.s32.totalorder %s181, %s182
      %p193 = scmp.eq.s32.totalorder %s21, 0
      %p194 = por %p192, %p193
      %p195 = scmp.ne.s32.totalorder %s181, %s182
      %p196 = scmp.eq.s32.totalorder %s22, 1
      %p197 = por %p195, %p196
      %p199 = scmp.ne.s32.totalorder %s182, %s198
      %p200 = scmp.eq.s32.totalorder %s22, 0
      %p201 = por %p199, %p200
      %p202 = scmp.le.s32.totalorder 1, %s16
      %p203 = scmp.lt.s32.totalorder %s16, 3
      %p204 = pnand %p202, %p203
      %p205 = pneg %p204
      // Predicated region
      $region9: #{tpu_custom_call.1} parent=5 // pred_check
        _
      $region10: #{tpu_custom_call.1} parent=5 // pred_check_branch
        %207 = sbr.rel (%p204) target = $region12
      $region11: #{tpu_custom_call.1} parent=5 // pred_region
        %s208 = ssub.s32 %s16, 1
        // Predicated region
        $region13: #{tpu_custom_call.1} parent=11 // pred_check
          %p209 = pneg %p63
        $region14: #{tpu_custom_call.1} parent=11 // pred_check_branch
          %211 = sbr.rel (%p209) target = $region16
        $region15: #{tpu_custom_call.1} parent=11 // pred_region
          _
        $region16: #{tpu_custom_call.1} parent=11 // pred_fallthru
          _
        // Predicated region
        $region17: #{tpu_custom_call.1} parent=11 // pred_check
          %p212 = pneg %p84
        $region18: #{tpu_custom_call.1} parent=11 // pred_check_branch
          %214 = sbr.rel (%p212) target = $region20
        $region19: #{tpu_custom_call.1} parent=11 // pred_region
          _
        $region20: #{tpu_custom_call.1} parent=11 // pred_fallthru
          _
        // Predicated region
        $region21: #{tpu_custom_call.1} parent=11 // pred_check
          %p215 = pneg %p105
        $region22: #{tpu_custom_call.1} parent=11 // pred_check_branch
          %217 = sbr.rel (%p215) target = $region24
        $region23: #{tpu_custom_call.1} parent=11 // pred_region
          _
        $region24: #{tpu_custom_call.1} parent=11 // pred_fallthru
          _
        // Predicated region
        $region25: #{tpu_custom_call.1} parent=11 // pred_check
          %p218 = pneg %p126
        $region26: #{tpu_custom_call.1} parent=11 // pred_check_branch
          %220 = sbr.rel (%p218) target = $region28
        $region27: #{tpu_custom_call.1} parent=11 // pred_region
          _
        $region28: #{tpu_custom_call.1} parent=11 // pred_fallthru
          _
        // Predicated region
        $region29: #{tpu_custom_call.1} parent=11 // pred_check
          %p221 = pneg %p147
        $region30: #{tpu_custom_call.1} parent=11 // pred_check_branch
          %223 = sbr.rel (%p221) target = $region32
        $region31: #{tpu_custom_call.1} parent=11 // pred_region
          _
        $region32: #{tpu_custom_call.1} parent=11 // pred_fallthru
          _
        // Predicated region
        $region33: #{tpu_custom_call.1} parent=11 // pred_check
          %p224 = pneg %p168
        $region34: #{tpu_custom_call.1} parent=11 // pred_check_branch
          %226 = sbr.rel (%p224) target = $region36
        $region35: #{tpu_custom_call.1} parent=11 // pred_region
          _
        $region36: #{tpu_custom_call.1} parent=11 // pred_fallthru
          _
      $region12: #{tpu_custom_call.1} parent=5 // pred_fallthru
        _
      %p227 = scmp.lt.s32.totalorder %s16, 2
      // Predicated region
      $region37: #{tpu_custom_call.1} parent=5 // pred_check
        %p228 = pneg %p227
      $region38: #{tpu_custom_call.1} parent=5 // pred_check_branch
        %230 = sbr.rel (%p228) target = $region40
      $region39: #{tpu_custom_call.1} parent=5 // pred_region
        // Predicated region
        $region41: #{tpu_custom_call.1} parent=39 // pred_check
          %p231 = pneg %p36
        $region42: #{tpu_custom_call.1} parent=39 // pred_check_branch
          %233 = sbr.rel (%p231) target = $region44
        $region43: #{tpu_custom_call.1} parent=39 // pred_region
          %p234 = scmp.lt.s32.totalorder %s16, 1
          %s235 = scalar_select %p234, %s16, 1
          %s236 = smul.addr %s235, 8
          %s237 = smul.addr %s236, 8
          %s238 = scalar_lea.vmem %s0, %s237
        $region44: #{tpu_custom_call.1} parent=39 // pred_fallthru
          _
      $region40: #{tpu_custom_call.1} parent=5 // pred_fallthru
        _
      %p239 = scmp.le.s32.totalorder 1, %s16
      %p240 = scmp.lt.s32.totalorder %s16, 3
      %p241 = pnand %p239, %p240
      %p242 = pneg %p241
      // Predicated region
      $region45: #{tpu_custom_call.1} parent=5 // pred_check
        _
      $region46: #{tpu_custom_call.1} parent=5 // pred_check_branch
        %244 = sbr.rel (%p241) target = $region48
      $region47: #{tpu_custom_call.1} parent=5 // pred_region
        %s245 = ssub.s32 %s16, 1
        %p246 = scmp.lt.s32.totalorder %s21, 1
        %s247 = scalar_select %p246, %s21, 1
        %s248 = smul.addr %s247, 8
        %s249 = smul.addr %s248, 8
        %s250 = scalar_lea.vmem %s0, %s249
        %p251 = pneg %p42
        %p252 = pneg %p39
        %p253 = pneg %p63
        %p254 = pneg %p60
        %p255 = pneg %p84
        %p256 = pneg %p81
        %p257 = pneg %p105
        %p258 = pneg %p102
        %p259 = pneg %p126
        %p260 = pneg %p123
        %p261 = pneg %p147
        %p262 = pneg %p144
        %p263 = pneg %p168
        %p264 = pneg %p165
        %p265 = pneg %p194
        %p266 = pneg %p191
        %s267 = sand.u32 %s181, 1
        %s268 = scalar_lea.sflag [#allocation6], %s267
        %s269 = sand.u32 %s181, 1
        %s270 = smul.addr %s269, 64
        %s271 = scalar_lea.vmem [#allocation5], %s270
        %p272 = scmp.lt.s32.totalorder %s21, 1
        %s273 = scalar_select %p272, %s21, 1
        %s274 = smul.addr %s273, 8
        %s275 = smul.addr %s274, 8
        %s276 = scalar_lea.vmem %s0, %s275
        %v282 = vld [vmem:[%s276] sm:$0xff]
        %v283 = vld [vmem:[%s276 + $0x8] sm:$0xff]
        %v284 = vld [vmem:[%s276 + $0x10] sm:$0xff]
        %v285 = vld [vmem:[%s276 + $0x18] sm:$0xff]
        %v286 = vld [vmem:[%s276 + $0x20] sm:$0xff]
        %v287 = vld [vmem:[%s276 + $0x28] sm:$0xff]
        %v288 = vld [vmem:[%s276 + $0x30] sm:$0xff]
        %v289 = vld [vmem:[%s276 + $0x38] sm:$0xff]
        %v290 = vpack.c.bf16 %v283, %v282
        %v291 = vpack.c.bf16 %v285, %v284
        %v292 = vpack.c.bf16 %v287, %v286
        %v293 = vpack.c.bf16 %v289, %v288
        %v294 = vld [vmem:[%s1] sm:$0xf]
        %v295 = vld [vmem:[%s1 + $0x4] sm:$0xf]
        %v296 = vld [vmem:[%s1 + $0x8] sm:$0xf]
        %v297 = vld [vmem:[%s1 + $0xc] sm:$0xf]
        %v298 = vld [vmem:[%s2] sm:$0x1]
        %v300 = vlaneseq
        %v301 = vshrl.u32 %v300, 7
        %v302 = vsub.s32 0, %v301
        %v303 = vrot.slane %v298, %v302
        %v309 = vunpack.c.l.b16 %v294
        %v310 = vunpack.c.l.b16 %v295
        %v311 = vunpack.c.l.b16 %v296
        %v312 = vunpack.c.l.b16 %v297
        %v313 = vpack.c.b16 %v310, %v309
        %v314 = vpack.c.b16 %v312, %v311
        %vm317 = vcmask 261120
        %v319 = vsel %vm317, %v290, 0
        %v322 = vsel %vm317, %v291, 0
        %v325 = vsel %vm317, %v292, 0
        %v328 = vsel %vm317, %v293, 0
        %330 = vmatprep.subr.bf16.mxu0 0
        %331 = vmatpush1.bf16.msra.mxu0 %v313
        %332 = vmatprep.subr.bf16.mxu0 0
        %333 = vmatpush1.bf16.msra.mxu0 %v314
        %334 = vmatprep.subr.bf16.mxu0 0
        %335 = vmatpush1.bf16.msra.mxu0 0
        %336 = vmatprep.subr.bf16.mxu0 0
        %337 = vmatpush1.bf16.msra.mxu0 0
        %338 = vmatprep.subr.bf16.mxu0 0
        %339 = vmatpush1.bf16.msra.mxu0 0
        %340 = vmatprep.subr.bf16.mxu0 0
        %341 = vmatpush1.bf16.msra.mxu0 0
        %342 = vmatprep.subr.bf16.mxu0 0
        %343 = vmatpush1.bf16.msra.mxu0 0
        %344 = vmatprep.subr.bf16.mxu0 0
        %345 = vmatpush1.bf16.msra.mxu0 0
        %346 = vmatprep.subr.bf16.mxu0 0
        %347 = vmatpush1.bf16.msra.mxu0 0
        %348 = vmatprep.subr.bf16.mxu0 0
        %349 = vmatpush1.bf16.msra.mxu0 0
        %350 = vmatprep.subr.bf16.mxu0 0
        %351 = vmatpush1.bf16.msra.mxu0 0
        %352 = vmatprep.subr.bf16.mxu0 0
        %353 = vmatpush1.bf16.msra.mxu0 0
        %354 = vmatprep.subr.bf16.mxu0 0
        %355 = vmatpush1.bf16.msra.mxu0 0
        %356 = vmatprep.subr.bf16.mxu0 0
        %357 = vmatpush1.bf16.msra.mxu0 0
        %358 = vmatprep.subr.bf16.mxu0 0
        %359 = vmatpush1.bf16.msra.mxu0 0
        %360 = vmatprep.subr.bf16.mxu0 0
        %361 = vmatpush1.bf16.msra.mxu0 0
        %362 = vmatprep.mubr.bf16.mxu0 0
        %363 = vmatmul.mubr.bf16.gmra.mrb[0].mxu0 %v319
        %v364 = vpop.f32.mrb[0].mxu0
        %v365 = vadd.f32 %v303, %v364
        %v366 = vpop.f32.mrb[0].mxu0
        %v367 = vpop.f32.mrb[0].mxu0
        %v368 = vadd.f32 %v303, %v367
        %v369 = vpop.f32.mrb[0].mxu0
        %370 = vmatprep.mubr.bf16.mxu0 0
        %371 = vmatmul.mubr.bf16.gmra.mrb[0].mxu0 %v322
        %v372 = vpop.f32.mrb[0].mxu0
        %v373 = vadd.f32 %v303, %v372
        %v374 = vpop.f32.mrb[0].mxu0
        %v375 = vpop.f32.mrb[0].mxu0
        %v376 = vadd.f32 %v303, %v375
        %v377 = vpop.f32.mrb[0].mxu0
        %378 = vmatprep.mubr.bf16.mxu0 0
        %379 = vmatmul.mubr.bf16.gmra.mrb[0].mxu0 %v325
        %v380 = vpop.f32.mrb[0].mxu0
        %v381 = vadd.f32 %v303, %v380
        %v382 = vpop.f32.mrb[0].mxu0
        %v383 = vpop.f32.mrb[0].mxu0
        %v384 = vadd.f32 %v303, %v383
        %v385 = vpop.f32.mrb[0].mxu0
        %386 = vmatprep.mubr.bf16.mxu0 0
        %387 = vmatmul.mubr.bf16.gmra.mrb[0].mxu0 %v328
        %v388 = vpop.f32.mrb[0].mxu0
        %v389 = vadd.f32 %v303, %v388
        %v390 = vpop.f32.mrb[0].mxu0
        %v391 = vpop.f32.mrb[0].mxu0
        %v392 = vadd.f32 %v303, %v391
        %v393 = vpop.f32.mrb[0].mxu0
        %394 = vdwg.mxu0
        %v395 = vpack.c.bf16 %v365, %v365
        %v396 = vpack.c.bf16 %v368, %v368
        %v397 = vpack.c.bf16 %v373, %v373
        %v398 = vpack.c.bf16 %v376, %v376
        %v399 = vpack.c.bf16 %v381, %v381
        %v400 = vpack.c.bf16 %v384, %v384
        %v401 = vpack.c.bf16 %v389, %v389
        %v402 = vpack.c.bf16 %v392, %v392
        %403 = vst [vmem:[#allocation2] sm:$0xf] %v395
        %404 = vst [vmem:[#allocation2 + $0x4] sm:$0xf] %v396
        %405 = vst [vmem:[#allocation2 + $0x8] sm:$0xf] %v397
        %406 = vst [vmem:[#allocation2 + $0xc] sm:$0xf] %v398
        %407 = vst [vmem:[#allocation2 + $0x10] sm:$0xf] %v399
        %408 = vst [vmem:[#allocation2 + $0x14] sm:$0xf] %v400
        %409 = vst [vmem:[#allocation2 + $0x18] sm:$0xf] %v401
        %410 = vst [vmem:[#allocation2 + $0x1c] sm:$0xf] %v402
        %v411 = vld [vmem:[%s3] sm:$0xf]
        %v412 = vld [vmem:[%s3 + $0x4] sm:$0x1]
        %v413 = vld [vmem:[%s4] sm:$0x1]
        %v414 = vld [vmem:[#allocation2] sm:$0xf]
        %v415 = vld [vmem:[#allocation2 + $0x4] sm:$0xf]
        %v416 = vld [vmem:[#allocation2 + $0x8] sm:$0xf]
        %v417 = vld [vmem:[#allocation2 + $0xc] sm:$0xf]
        %v418 = vld [vmem:[#allocation2 + $0x10] sm:$0xf]
        %v419 = vld [vmem:[#allocation2 + $0x14] sm:$0xf]
        %v420 = vld [vmem:[#allocation2 + $0x18] sm:$0xf]
        %v421 = vld [vmem:[#allocation2 + $0x1c] sm:$0xf]
        %v430 = vunpack.c.l.b16 %v414
        %v431 = vunpack.c.l.b16 %v415
        %v432 = vunpack.c.l.b16 %v416
        %v433 = vunpack.c.l.b16 %v417
        %v434 = vunpack.c.l.b16 %v418
        %v435 = vunpack.c.l.b16 %v419
        %v436 = vunpack.c.l.b16 %v420
        %v437 = vunpack.c.l.b16 %v421
        %v438 = vpack.c.b16 %v430, %v430
        %v439 = vpack.c.b16 %v431, %v431
        %v440 = vpack.c.b16 %v432, %v432
        %v441 = vpack.c.b16 %v433, %v433
        %v442 = vpack.c.b16 %v434, %v434
        %v443 = vpack.c.b16 %v435, %v435
        %v444 = vpack.c.b16 %v436, %v436
        %v445 = vpack.c.b16 %v437, %v437
        %v447 = vshrl.u32 %v438, 16
        %v449 = vrot.slane %v447, 7
        %v450 = vshll.u32 %v438, 16
        %v452 = vor.u32 %v449, %v450
        %v454 = vshrl.u32 %v439, 16
        %v456 = vrot.slane %v454, 7
        %v457 = vshll.u32 %v439, 16
        %v459 = vor.u32 %v456, %v457
        %v461 = vshrl.u32 %v440, 16
        %v463 = vrot.slane %v461, 7
        %v464 = vshll.u32 %v440, 16
        %v466 = vor.u32 %v463, %v464
        %v468 = vshrl.u32 %v441, 16
        %v470 = vrot.slane %v468, 7
        %v471 = vshll.u32 %v441, 16
        %v473 = vor.u32 %v470, %v471
        %v475 = vshrl.u32 %v442, 16
        %v477 = vrot.slane %v475, 7
        %v478 = vshll.u32 %v442, 16
        %v480 = vor.u32 %v477, %v478
        %v482 = vshrl.u32 %v443, 16
        %v484 = vrot.slane %v482, 7
        %v485 = vshll.u32 %v443, 16
        %v487 = vor.u32 %v484, %v485
        %v489 = vshrl.u32 %v444, 16
        %v491 = vrot.slane %v489, 7
        %v492 = vshll.u32 %v444, 16
        %v494 = vor.u32 %v491, %v492
        %v496 = vshrl.u32 %v445, 16
        %v498 = vrot.slane %v496, 7
        %v499 = vshll.u32 %v445, 16
        %v501 = vor.u32 %v498, %v499
        %vm510 = vcmask 1040384
        %vm511 = vsmask.f32 256
        %vm512 = vmand %vm510, %vm511
        %v513 = vsel %vm512, 0, %v452
        %v514 = vsel %vm512, 0, %v459
        %v515 = vsel %vm512, 0, %v466
        %v516 = vsel %vm512, 0, %v473
        %v517 = vsel %vm512, 0, %v480
        %v518 = vsel %vm512, 0, %v487
        %v519 = vsel %vm512, 0, %v494
        %v520 = vsel %vm512, 0, %v501
        %v521 = vrot.slane %v450, 1
        %v522 = vor.u32 %v447, %v521
        %v523 = vrot.slane %v457, 1
        %v524 = vor.u32 %v454, %v523
        %v525 = vrot.slane %v464, 1
        %v526 = vor.u32 %v461, %v525
        %v527 = vrot.slane %v471, 1
        %v528 = vor.u32 %v468, %v527
        %v529 = vrot.slane %v478, 1
        %v530 = vor.u32 %v475, %v529
        %v531 = vrot.slane %v485, 1
        %v532 = vor.u32 %v482, %v531
        %v533 = vrot.slane %v492, 1
        %v534 = vor.u32 %v489, %v533
        %v535 = vrot.slane %v499, 1
        %v536 = vor.u32 %v496, %v535
        %vm545 = vcmask 1043456
        %vm546 = vsmask.f32 3328
        %vm547 = vmand %vm545, %vm546
        %v548 = vsel %vm547, %v522, 0
        %v549 = vsel %vm547, %v524, 0
        %v550 = vsel %vm547, %v526, 0
        %v551 = vsel %vm547, %v528, 0
        %v552 = vsel %vm547, %v530, 0
        %v553 = vsel %vm547, %v532, 0
        %v554 = vsel %vm547, %v534, 0
        %v555 = vsel %vm547, %v536, 0
        %v557 = vpack.i.b16 %v411, %v411
        %v559 = vlaneseq
        %v560 = vshrl.u32 %v559, 7
        %v561 = vsub.s32 0, %v560
        %v562 = vrot.slane %v557, %v561
        %v563 = vmul.bf16 %v513, %v562
        %v564 = vmul.bf16 %v514, %v562
        %v565 = vmul.bf16 %v515, %v562
        %v566 = vmul.bf16 %v516, %v562
        %v567 = vmul.bf16 %v517, %v562
        %v568 = vmul.bf16 %v518, %v562
        %v569 = vmul.bf16 %v519, %v562
        %v570 = vshrl.u32 %v411, 16
        %v571 = vpack.i.b16 %v570, %v570
        %v573 = vlaneseq
        %v574 = vshrl.u32 %v573, 7
        %v575 = vsub.s32 0, %v574
        %v576 = vrot.slane %v571, %v575
        %v577 = vmul.bf16 %v414, %v576
        %v578 = vmul.bf16 %v415, %v576
        %v579 = vmul.bf16 %v416, %v576
        %v580 = vmul.bf16 %v417, %v576
        %v581 = vmul.bf16 %v418, %v576
        %v582 = vmul.bf16 %v419, %v576
        %v583 = vmul.bf16 %v420, %v576
        %v584 = vadd.bf16 %v563, %v577
        %v585 = vadd.bf16 %v564, %v578
        %v586 = vadd.bf16 %v565, %v579
        %v587 = vadd.bf16 %v566, %v580
        %v588 = vadd.bf16 %v567, %v581
        %v589 = vadd.bf16 %v568, %v582
        %v590 = vadd.bf16 %v569, %v583
        %v591 = vlaneseq
        %v592 = vshrl.u32 %v591, 7
        %v593 = vsub.s32 1, %v592
        %v594 = vrot.slane %v557, %v593
        %v595 = vmul.bf16 %v548, %v594
        %v596 = vmul.bf16 %v549, %v594
        %v597 = vmul.bf16 %v550, %v594
        %v598 = vmul.bf16 %v551, %v594
        %v599 = vmul.bf16 %v552, %v594
        %v600 = vmul.bf16 %v553, %v594
        %v601 = vmul.bf16 %v554, %v594
        %v602 = vadd.bf16 %v584, %v595
        %v603 = vadd.bf16 %v585, %v596
        %v604 = vadd.bf16 %v586, %v597
        %v605 = vadd.bf16 %v587, %v598
        %v606 = vadd.bf16 %v588, %v599
        %v607 = vadd.bf16 %v589, %v600
        %v608 = vadd.bf16 %v590, %v601
        %v609 = vlaneseq
        %v610 = vshrl.u32 %v609, 7
        %v611 = vsub.s32 1, %v610
        %v612 = vrot.slane %v571, %v611
        %v613 = vmul.bf16 %v513, %v612
        %v614 = vmul.bf16 %v514, %v612
        %v615 = vmul.bf16 %v515, %v612
        %v616 = vmul.bf16 %v516, %v612
        %v617 = vmul.bf16 %v517, %v612
        %v618 = vmul.bf16 %v518, %v612
        %v619 = vmul.bf16 %v519, %v612
        %v620 = vmul.bf16 %v520, %v612
        %v621 = vlaneseq
        %v622 = vshrl.u32 %v621, 7
        %v623 = vsub.s32 2, %v622
        %v624 = vrot.slane %v557, %v623
        %v625 = vmul.bf16 %v414, %v624
        %v626 = vmul.bf16 %v415, %v624
        %v627 = vmul.bf16 %v416, %v624
        %v628 = vmul.bf16 %v417, %v624
        %v629 = vmul.bf16 %v418, %v624
        %v630 = vmul.bf16 %v419, %v624
        %v631 = vmul.bf16 %v420, %v624
        %v632 = vmul.bf16 %v421, %v624
        %v633 = vadd.bf16 %v613, %v625
        %v634 = vadd.bf16 %v614, %v626
        %v635 = vadd.bf16 %v615, %v627
        %v636 = vadd.bf16 %v616, %v628
        %v637 = vadd.bf16 %v617, %v629
        %v638 = vadd.bf16 %v618, %v630
        %v639 = vadd.bf16 %v619, %v631
        %v640 = vadd.bf16 %v620, %v632
        %v641 = vlaneseq
        %v642 = vshrl.u32 %v641, 7
        %v643 = vsub.s32 2, %v642
        %v644 = vrot.slane %v571, %v643
        %v645 = vmul.bf16 %v548, %v644
        %v646 = vmul.bf16 %v549, %v644
        %v647 = vmul.bf16 %v550, %v644
        %v648 = vmul.bf16 %v551, %v644
        %v649 = vmul.bf16 %v552, %v644
        %v650 = vmul.bf16 %v553, %v644
        %v651 = vmul.bf16 %v554, %v644
        %v652 = vmul.bf16 %v555, %v644
        %v653 = vadd.bf16 %v633, %v645
        %v654 = vadd.bf16 %v634, %v646
        %v655 = vadd.bf16 %v635, %v647
        %v656 = vadd.bf16 %v636, %v648
        %v657 = vadd.bf16 %v637, %v649
        %v658 = vadd.bf16 %v638, %v650
        %v659 = vadd.bf16 %v639, %v651
        %v660 = vadd.bf16 %v640, %v652
        %v661 = vlaneseq
        %v662 = vshrl.u32 %v661, 7
        %v663 = vsub.s32 3, %v662
        %v664 = vrot.slane %v557, %v663
        %v665 = vmul.bf16 %v514, %v664
        %v666 = vmul.bf16 %v515, %v664
        %v667 = vmul.bf16 %v516, %v664
        %v668 = vmul.bf16 %v517, %v664
        %v669 = vmul.bf16 %v518, %v664
        %v670 = vmul.bf16 %v519, %v664
        %v671 = vmul.bf16 %v520, %v664
        %v672 = vlaneseq
        %v673 = vshrl.u32 %v672, 7
        %v674 = vsub.s32 3, %v673
        %v675 = vrot.slane %v571, %v674
        %v676 = vmul.bf16 %v415, %v675
        %v677 = vmul.bf16 %v416, %v675
        %v678 = vmul.bf16 %v417, %v675
        %v679 = vmul.bf16 %v418, %v675
        %v680 = vmul.bf16 %v419, %v675
        %v681 = vmul.bf16 %v420, %v675
        %v682 = vmul.bf16 %v421, %v675
        %v683 = vadd.bf16 %v665, %v676
        %v684 = vadd.bf16 %v666, %v677
        %v685 = vadd.bf16 %v667, %v678
        %v686 = vadd.bf16 %v668, %v679
        %v687 = vadd.bf16 %v669, %v680
        %v688 = vadd.bf16 %v670, %v681
        %v689 = vadd.bf16 %v671, %v682
        %v691 = vpack.i.b16 %v412, %v412
        %v693 = vlaneseq
        %v694 = vshrl.u32 %v693, 7
        %v695 = vsub.s32 0, %v694
        %v696 = vrot.slane %v691, %v695
        %v697 = vmul.bf16 %v549, %v696
        %v698 = vmul.bf16 %v550, %v696
        %v699 = vmul.bf16 %v551, %v696
        %v700 = vmul.bf16 %v552, %v696
        %v701 = vmul.bf16 %v553, %v696
        %v702 = vmul.bf16 %v554, %v696
        %v703 = vmul.bf16 %v555, %v696
        %v704 = vadd.bf16 %v683, %v697
        %v705 = vadd.bf16 %v684, %v698
        %v706 = vadd.bf16 %v685, %v699
        %v707 = vadd.bf16 %v686, %v700
        %v708 = vadd.bf16 %v687, %v701
        %v709 = vadd.bf16 %v688, %v702
        %v710 = vadd.bf16 %v689, %v703
        %711 = vst [vmem:[#allocation3] sm:$0xf] %v653
        %712 = vst [vmem:[#allocation3 + $0x4] sm:$0xf] %v654
        %713 = vst [vmem:[#allocation3 + $0x8] sm:$0xf] %v655
        %714 = vst [vmem:[#allocation3 + $0xc] sm:$0xf] %v656
        %715 = vst [vmem:[#allocation3 + $0x10] sm:$0xf] %v657
        %716 = vst [vmem:[#allocation3 + $0x14] sm:$0xf] %v658
        %717 = vst [vmem:[#allocation3 + $0x18] sm:$0xf] %v659
        %718 = vst [vmem:[#allocation3 + $0x1c] sm:$0xf] %v660
        %s719 = scalar_lea.vmem [#allocation3], 4
        %v720 = vld [vmem:[%s719] sm:$0xf]
        %v721 = vld [vmem:[%s719 + $0x4] sm:$0xf]
        %v722 = vld [vmem:[%s719 + $0x8] sm:$0xf]
        %v723 = vld [vmem:[%s719 + $0xc] sm:$0xf]
        %v724 = vld [vmem:[%s719 + $0x10] sm:$0xf]
        %v725 = vld [vmem:[%s719 + $0x14] sm:$0xf]
        %v726 = vld [vmem:[%s719 + $0x18] sm:$0xf]
        %v727 = vadd.bf16 %v720, %v602
        %v728 = vadd.bf16 %v721, %v603
        %v729 = vadd.bf16 %v722, %v604
        %v730 = vadd.bf16 %v723, %v605
        %v731 = vadd.bf16 %v724, %v606
        %v732 = vadd.bf16 %v725, %v607
        %v733 = vadd.bf16 %v726, %v608
        %734 = vst [vmem:[%s719] sm:$0xf] %v727
        %735 = vst [vmem:[%s719 + $0x4] sm:$0xf] %v728
        %736 = vst [vmem:[%s719 + $0x8] sm:$0xf] %v729
        %737 = vst [vmem:[%s719 + $0xc] sm:$0xf] %v730
        %738 = vst [vmem:[%s719 + $0x10] sm:$0xf] %v731
        %739 = vst [vmem:[%s719 + $0x14] sm:$0xf] %v732
        %740 = vst [vmem:[%s719 + $0x18] sm:$0xf] %v733
        %v741 = vld [vmem:[#allocation3] sm:$0xf]
        %v742 = vld [vmem:[#allocation3 + $0x4] sm:$0xf]
        %v743 = vld [vmem:[#allocation3 + $0x8] sm:$0xf]
        %v744 = vld [vmem:[#allocation3 + $0xc] sm:$0xf]
        %v745 = vld [vmem:[#allocation3 + $0x10] sm:$0xf]
        %v746 = vld [vmem:[#allocation3 + $0x14] sm:$0xf]
        %v747 = vld [vmem:[#allocation3 + $0x18] sm:$0xf]
        %v748 = vadd.bf16 %v741, %v704
        %v749 = vadd.bf16 %v742, %v705
        %v750 = vadd.bf16 %v743, %v706
        %v751 = vadd.bf16 %v744, %v707
        %v752 = vadd.bf16 %v745, %v708
        %v753 = vadd.bf16 %v746, %v709
        %v754 = vadd.bf16 %v747, %v710
        %755 = vst [vmem:[#allocation3] sm:$0xf] %v748
        %756 = vst [vmem:[#allocation3 + $0x4] sm:$0xf] %v749
        %757 = vst [vmem:[#allocation3 + $0x8] sm:$0xf] %v750
        %758 = vst [vmem:[#allocation3 + $0xc] sm:$0xf] %v751
        %759 = vst [vmem:[#allocation3 + $0x10] sm:$0xf] %v752
        %760 = vst [vmem:[#allocation3 + $0x14] sm:$0xf] %v753
        %761 = vst [vmem:[#allocation3 + $0x18] sm:$0xf] %v754
        %v762 = vld [vmem:[#allocation3] sm:$0xf]
        %v763 = vld [vmem:[#allocation3 + $0x4] sm:$0xf]
        %v764 = vld [vmem:[#allocation3 + $0x8] sm:$0xf]
        %v765 = vld [vmem:[#allocation3 + $0xc] sm:$0xf]
        %v766 = vld [vmem:[#allocation3 + $0x10] sm:$0xf]
        %v767 = vld [vmem:[#allocation3 + $0x14] sm:$0xf]
        %v768 = vld [vmem:[#allocation3 + $0x18] sm:$0xf]
        %v769 = vld [vmem:[#allocation3 + $0x1c] sm:$0xf]
        %v771 = vpack.i.b16 %v413, %v413
        %v773 = vlaneseq
        %v774 = vshrl.u32 %v773, 7
        %v775 = vsub.s32 0, %v774
        %v776 = vrot.slane %v771, %v775
        %v777 = vadd.bf16 %v762, %v776
        %v778 = vadd.bf16 %v763, %v776
        %v779 = vadd.bf16 %v764, %v776
        %v780 = vadd.bf16 %v765, %v776
        %v781 = vadd.bf16 %v766, %v776
        %v782 = vadd.bf16 %v767, %v776
        %v783 = vadd.bf16 %v768, %v776
        %v784 = vadd.bf16 %v769, %v776
        %v785 = vmul.bf16 %v777, 1056980736
        %v786 = vmul.bf16 %v778, 1056980736
        %v787 = vmul.bf16 %v779, 1056980736
        %v788 = vmul.bf16 %v780, 1056980736
        %v789 = vmul.bf16 %v781, 1056980736
        %v790 = vmul.bf16 %v782, 1056980736
        %v791 = vmul.bf16 %v783, 1056980736
        %v792 = vmul.bf16 %v784, 1056980736
        %v793 = vmul.bf16 %v777, 1027030327
        %v794 = vmul.bf16 %v778, 1027030327
        %v795 = vmul.bf16 %v779, 1027030327
        %v796 = vmul.bf16 %v780, 1027030327
        %v797 = vmul.bf16 %v781, 1027030327
        %v798 = vmul.bf16 %v782, 1027030327
        %v799 = vmul.bf16 %v783, 1027030327
        %v800 = vmul.bf16 %v784, 1027030327
        %v801 = vmul.bf16 %v793, %v777
        %v802 = vmul.bf16 %v794, %v778
        %v803 = vmul.bf16 %v795, %v779
        %v804 = vmul.bf16 %v796, %v780
        %v805 = vmul.bf16 %v797, %v781
        %v806 = vmul.bf16 %v798, %v782
        %v807 = vmul.bf16 %v799, %v783
        %v808 = vmul.bf16 %v800, %v784
        %v809 = vmul.bf16 %v801, %v777
        %v810 = vmul.bf16 %v802, %v778
        %v811 = vmul.bf16 %v803, %v779
        %v812 = vmul.bf16 %v804, %v780
        %v813 = vmul.bf16 %v805, %v781
        %v814 = vmul.bf16 %v806, %v782
        %v815 = vmul.bf16 %v807, %v783
        %v816 = vmul.bf16 %v808, %v784
        %v817 = vadd.bf16 %v777, %v809
        %v818 = vadd.bf16 %v778, %v810
        %v819 = vadd.bf16 %v779, %v811
        %v820 = vadd.bf16 %v780, %v812
        %v821 = vadd.bf16 %v781, %v813
        %v822 = vadd.bf16 %v782, %v814
        %v823 = vadd.bf16 %v783, %v815
        %v824 = vadd.bf16 %v784, %v816
        %v825 = vmul.bf16 %v817, 1061961548
        %v826 = vmul.bf16 %v818, 1061961548
        %v827 = vmul.bf16 %v819, 1061961548
        %v828 = vmul.bf16 %v820, 1061961548
        %v829 = vmul.bf16 %v821, 1061961548
        %v830 = vmul.bf16 %v822, 1061961548
        %v831 = vmul.bf16 %v823, 1061961548
        %v832 = vmul.bf16 %v824, 1061961548
        %v833 = vtanh.bf16.pop %v825
        %v834 = vtanh.bf16.pop %v826
        %v835 = vtanh.bf16.pop %v827
        %v836 = vtanh.bf16.pop %v828
        %v837 = vtanh.bf16.pop %v829
        %v838 = vtanh.bf16.pop %v830
        %v839 = vtanh.bf16.pop %v831
        %v840 = vtanh.bf16.pop %v832
        %v841 = vadd.bf16 %v833, 1065369472
        %v842 = vadd.bf16 %v834, 1065369472
        %v843 = vadd.bf16 %v835, 1065369472
        %v844 = vadd.bf16 %v836, 1065369472
        %v845 = vadd.bf16 %v837, 1065369472
        %v846 = vadd.bf16 %v838, 1065369472
        %v847 = vadd.bf16 %v839, 1065369472
        %v848 = vadd.bf16 %v840, 1065369472
        %v849 = vmul.bf16 %v785, %v841
        %v850 = vmul.bf16 %v786, %v842
        %v851 = vmul.bf16 %v787, %v843
        %v852 = vmul.bf16 %v788, %v844
        %v853 = vmul.bf16 %v789, %v845
        %v854 = vmul.bf16 %v790, %v846
        %v855 = vmul.bf16 %v791, %v847
        %v856 = vmul.bf16 %v792, %v848
        %v865 = vunpack.c.l.b16 %v849
        %v866 = vunpack.c.l.b16 %v850
        %v867 = vunpack.c.l.b16 %v851
        %v868 = vunpack.c.l.b16 %v852
        %v869 = vunpack.c.l.b16 %v853
        %v870 = vunpack.c.l.b16 %v854
        %v871 = vunpack.c.l.b16 %v855
        %v872 = vunpack.c.l.b16 %v856
        %v873 = vpack.c.b16 %v866, %v865
        %v874 = vpack.c.b16 %v868, %v867
        %v875 = vpack.c.b16 %v870, %v869
        %v876 = vpack.c.b16 %v872, %v871
        %881 = vst [vmem:[#allocation4] sm:$0xff] %v873
        %882 = vst [vmem:[#allocation4 + $0x8] sm:$0xff] %v874
        %883 = vst [vmem:[#allocation4 + $0x10] sm:$0xff] %v875
        %884 = vst [vmem:[#allocation4 + $0x18] sm:$0xff] %v876
        %v885 = vld [vmem:[#allocation4] sm:$0xff]
        %v886 = vld [vmem:[#allocation4 + $0x8] sm:$0xff]
        %v887 = vld [vmem:[#allocation4 + $0x10] sm:$0xff]
        %v888 = vld [vmem:[#allocation4 + $0x18] sm:$0xff]
        %v889 = vld [vmem:[%s5] sm:$0xf]
        %v890 = vld [vmem:[%s5 + $0x4] sm:$0xf]
        %v891 = vld [vmem:[%s5 + $0x8] sm:$0xf]
        %v892 = vld [vmem:[%s5 + $0xc] sm:$0xf]
        %v893 = vld [vmem:[%s5 + $0x10] sm:$0xf]
        %v894 = vld [vmem:[%s5 + $0x14] sm:$0xf]
        %v895 = vld [vmem:[%s5 + $0x18] sm:$0xf]
        %v896 = vld [vmem:[%s5 + $0x1c] sm:$0xf]
        %v897 = vld [vmem:[%s5 + $0x20] sm:$0xf]
        %v898 = vld [vmem:[%s5 + $0x24] sm:$0xf]
        %v899 = vld [vmem:[%s5 + $0x28] sm:$0xf]
        %v900 = vld [vmem:[%s5 + $0x2c] sm:$0xf]
        %v901 = vld [vmem:[%s5 + $0x30] sm:$0xf]
        %v902 = vld [vmem:[%s5 + $0x34] sm:$0xf]
        %v903 = vld [vmem:[%s5 + $0x38] sm:$0xf]
        %v904 = vld [vmem:[%s5 + $0x3c] sm:$0xf]
        %v905 = vld [vmem:[%s6] sm:$0x1]
        %v907 = vlaneseq
        %v908 = vshrl.u32 %v907, 7
        %v909 = vsub.s32 0, %v908
        %v910 = vrot.slane %v905, %v909
        %v928 = vunpack.c.l.b16 %v889
        %v929 = vunpack.c.l.b16 %v890
        %v930 = vunpack.c.l.b16 %v891
        %v931 = vunpack.c.l.b16 %v892
        %v932 = vunpack.c.l.b16 %v893
        %v933 = vunpack.c.l.b16 %v894
        %v934 = vunpack.c.l.b16 %v895
        %v935 = vunpack.c.l.b16 %v896
        %v936 = vunpack.c.l.b16 %v897
        %v937 = vunpack.c.l.b16 %v898
        %v938 = vunpack.c.l.b16 %v899
        %v939 = vunpack.c.l.b16 %v900
        %v940 = vunpack.c.l.b16 %v901
        %v941 = vunpack.c.l.b16 %v902
        %v942 = vunpack.c.l.b16 %v903
        %v943 = vunpack.c.l.b16 %v904
        %v944 = vpack.c.b16 %v929, %v928
        %v945 = vpack.c.b16 %v931, %v930
        %v946 = vpack.c.b16 %v933, %v932
        %v947 = vpack.c.b16 %v935, %v934
        %v948 = vpack.c.b16 %v937, %v936
        %v949 = vpack.c.b16 %v939, %v938
        %v950 = vpack.c.b16 %v941, %v940
        %v951 = vpack.c.b16 %v943, %v942
        %960 = vmatprep.subr.bf16.mxu0 0
        %961 = vmatpush1.bf16.msra.mxu0 %v944
        %962 = vmatprep.subr.bf16.mxu0 0
        %963 = vmatpush1.bf16.msra.mxu0 %v945
        %964 = vmatprep.subr.bf16.mxu0 0
        %965 = vmatpush1.bf16.msra.mxu0 %v946
        %966 = vmatprep.subr.bf16.mxu0 0
        %967 = vmatpush1.bf16.msra.mxu0 %v947
        %968 = vmatprep.subr.bf16.mxu0 0
        %969 = vmatpush1.bf16.msra.mxu0 %v948
        %970 = vmatprep.subr.bf16.mxu0 0
        %971 = vmatpush1.bf16.msra.mxu0 %v949
        %972 = vmatprep.subr.bf16.mxu0 0
        %973 = vmatpush1.bf16.msra.mxu0 %v950
        %974 = vmatprep.subr.bf16.mxu0 0
        %975 = vmatpush1.bf16.msra.mxu0 %v951
        %976 = vmatprep.subr.bf16.mxu0 0
        %977 = vmatpush1.bf16.msra.mxu0 0
        %978 = vmatprep.subr.bf16.mxu0 0
        %979 = vmatpush1.bf16.msra.mxu0 0
        %980 = vmatprep.subr.bf16.mxu0 0
        %981 = vmatpush1.bf16.msra.mxu0 0
        %982 = vmatprep.subr.bf16.mxu0 0
        %983 = vmatpush1.bf16.msra.mxu0 0
        %984 = vmatprep.subr.bf16.mxu0 0
        %985 = vmatpush1.bf16.msra.mxu0 0
        %986 = vmatprep.subr.bf16.mxu0 0
        %987 = vmatpush1.bf16.msra.mxu0 0
        %988 = vmatprep.subr.bf16.mxu0 0
        %989 = vmatpush1.bf16.msra.mxu0 0
        %990 = vmatprep.subr.bf16.mxu0 0
        %991 = vmatpush1.bf16.msra.mxu0 0
        %992 = vmatprep.mubr.bf16.mxu0 0
        %993 = vmatmul.mubr.bf16.gmra.mrb[0].mxu0 %v885
        %v994 = vpop.f32.mrb[0].mxu0
        %v995 = vadd.f32 %v910, %v994
        %v996 = vpop.f32.mrb[0].mxu0
        %v997 = vpop.f32.mrb[0].mxu0
        %v998 = vadd.f32 %v910, %v997
        %v999 = vpop.f32.mrb[0].mxu0
        %1000 = vmatprep.mubr.bf16.mxu0 0
        %1001 = vmatmul.mubr.bf16.gmra.mrb[0].mxu0 %v886
        %v1002 = vpop.f32.mrb[0].mxu0
        %v1003 = vadd.f32 %v910, %v1002
        %v1004 = vpop.f32.mrb[0].mxu0
        %v1005 = vpop.f32.mrb[0].mxu0
        %v1006 = vadd.f32 %v910, %v1005
        %v1007 = vpop.f32.mrb[0].mxu0
        %1008 = vmatprep.mubr.bf16.mxu0 0
        %1009 = vmatmul.mubr.bf16.gmra.mrb[0].mxu0 %v887
        %v1010 = vpop.f32.mrb[0].mxu0
        %v1011 = vadd.f32 %v910, %v1010
        %v1012 = vpop.f32.mrb[0].mxu0
        %v1013 = vpop.f32.mrb[0].mxu0
        %v1014 = vadd.f32 %v910, %v1013
        %v1015 = vpop.f32.mrb[0].mxu0
        %1016 = vmatprep.mubr.bf16.mxu0 0
        %1017 = vmatmul.mubr.bf16.gmra.mrb[0].mxu0 %v888
        %v1018 = vpop.f32.mrb[0].mxu0
        %v1019 = vadd.f32 %v910, %v1018
        %v1020 = vpop.f32.mrb[0].mxu0
        %v1021 = vpop.f32.mrb[0].mxu0
        %v1022 = vadd.f32 %v910, %v1021
        %v1023 = vpop.f32.mrb[0].mxu0
        %1024 = vdwg.mxu0
        %1025 = vst [vmem:[%s271] sm:$0xff] %v995
        %1026 = vst [vmem:[%s271 + $0x8] sm:$0xff] %v998
        %1027 = vst [vmem:[%s271 + $0x10] sm:$0xff] %v1003
        %1028 = vst [vmem:[%s271 + $0x18] sm:$0xff] %v1006
        %1029 = vst [vmem:[%s271 + $0x20] sm:$0xff] %v1011
        %1030 = vst [vmem:[%s271 + $0x28] sm:$0xff] %v1014
        %1031 = vst [vmem:[%s271 + $0x30] sm:$0xff] %v1019
        %1032 = vst [vmem:[%s271 + $0x38] sm:$0xff] %v1022
        %s1033 = sand.u32 %s181, 1
        %s1034 = scalar_lea.sflag [#allocation6], %s1033
        %s1035 = sand.u32 %s181, 1
        %s1036 = smul.addr %s1035, 64
        %s1037 = scalar_lea.vmem [#allocation5], %s1036
        // Predicated region
        $region49: #{tpu_custom_call.1} parent=47 // pred_check
          %p1038 = pneg %p191
        $region50: #{tpu_custom_call.1} parent=47 // pred_check_branch
          %1040 = sbr.rel (%p1038) target = $region52
        $region51: #{tpu_custom_call.1} parent=47 // pred_region
          %s1042 = ssub.s32 1024, 1024
          %1043 = vsyncadd %s1034, %s1042
          %s1044 = smul.addr %s21, 8
          %s1045 = smul.addr %s1044, 128
          %s1046 = scalar_lea.hbm %s7, %s1045
          %s1047 = sshll.u32 %s1037, 4
          %s1048 = int_to_ptr.vmem [resolvable:$true] %s1047
          %1053 = dma.vmem_to_hbm [thread:$0]  %s1048, 1024, %s1046, %s1034, 128, 128, 8
        $region52: #{tpu_custom_call.1} parent=47 // pred_fallthru
          _
      $region48: #{tpu_custom_call.1} parent=5 // pred_fallthru
        _
      %p1054 = scmp.le.s32.totalorder 2, %s16
      // Predicated region
      $region53: #{tpu_custom_call.1} parent=5 // pred_check
        %p1055 = pneg %p1054
      $region54: #{tpu_custom_call.1} parent=5 // pred_check_branch
        %1057 = sbr.rel (%p1055) target = $region56
      $region55: #{tpu_custom_call.1} parent=5 // pred_region
        %s1058 = ssub.s32 %s16, 2
        // Predicated region
        $region57: #{tpu_custom_call.1} parent=55 // pred_check
          %p1059 = pneg %p197
        $region58: #{tpu_custom_call.1} parent=55 // pred_check_branch
          %1061 = sbr.rel (%p1059) target = $region60
        $region59: #{tpu_custom_call.1} parent=55 // pred_region
          %s1062 = sand.u32 %s182, 1
          %s1063 = scalar_lea.sflag [#allocation6], %s1062
          %s1064 = sand.u32 %s182, 1
          %s1065 = smul.addr %s1064, 64
          %s1066 = scalar_lea.vmem [#allocation5], %s1065
          %1067 = dma.done %s1063, 1024
        $region60: #{tpu_custom_call.1} parent=55 // pred_fallthru
          _
      $region56: #{tpu_custom_call.1} parent=5 // pred_fallthru
        _
    $region6: #{tpu_custom_call.1} parent=1 // loop_footer
      %s20 = sadd.s32 1, %s16
    $region7: #{tpu_custom_call.1} parent=1 // loop_footer_branch
      %15 = sbr.rel target = $region3
    $region8: #{tpu_custom_call.1} parent=1 // loop_exit
      _
    %1068 = vsyncpa [#allocation6], 1
    %s1069 = scalar_lea.sflag [#allocation6], 1
    %1070 = vsyncpa %s1069, 1

</llo_original>
